<compile_context>
chip_gen: v7x
topology: tpu7x:2x2x1
jax: 0.10.0
libtpu: 0.0.40
codegen_flags: <defaults>
</compile_context>

<pallas_src>
import functools

import jax
import jax.numpy as jnp
from jax import lax
from jax.experimental import pallas as pl
from jax.experimental.pallas import tpu as pltpu


def _code2vec_kernel(paths_ref, embw_ref, a_ref, wout_ref, bout_ref, out_ref):
    P, E = embw_ref.shape
    BT, O = out_ref.shape
    M = paths_ref.shape[1]           # = BT * L (flattened block of path ids)
    L = M // BT

    # ---- embedding gather (+ folded W) as one canonical [M,P]@[P,E] matmul --
    idx = paths_ref[0]                                        # [M, 1] int32
    cols = lax.broadcasted_iota(jnp.int32, (M, P), 1)         # [M, P]
    onehot = (cols == idx).astype(embw_ref.dtype)             # [M, P] (exact)
    # xf[m, e] = tanh( (emb @ W^T)[paths[m], e] )   (f32 accumulation)
    xf = jnp.tanh(
        jnp.dot(onehot, embw_ref[...],
                preferred_element_type=jnp.float32))          # [M, E] f32

    # View as [BT, L, E] (free relabel: L sublanes per sample slice).
    x3 = xf.reshape(BT, L, E)

    # ---- attention weights: z = softmax_L(x . a) ----------------------------
    s = jnp.sum(x3 * a_ref[...], axis=-1, keepdims=True)      # [BT, L, 1]
    smax = jnp.max(s, axis=1, keepdims=True)                  # [BT, 1, 1]
    ez = jnp.exp(s - smax)
    z = ez / jnp.sum(ez, axis=1, keepdims=True)               # exact divide

    # ---- code vector: v = sum_l z[l] * x[l, :] ------------------------------
    v = jnp.sum(x3 * z, axis=1)                                # [BT, E]

    # ---- output layer + exact softmax over classes --------------------------
    logits = jnp.dot(v.astype(wout_ref.dtype), wout_ref[...],
                     preferred_element_type=jnp.float32) + bout_ref[...]
    lmax = jnp.max(logits, axis=-1, keepdims=True)
    el = jnp.exp(logits - lmax)
    out_ref[...] = (el / jnp.sum(el, axis=-1, keepdims=True)).astype(out_ref.dtype)


def code2vec_forward(starts, paths, ends, params, *, b_tile=None,
                     weights_dtype=jnp.bfloat16):
    """starts/paths/ends: [B, L] int32.  Only `paths` drives compute (the
    PyTorch module ignores starts/ends in forward; dropout is never applied)."""
    del starts, ends
    B, L = paths.shape
    emb = params["emb"]            # [P, E]
    W = params["W"]                # [E, E]
    a_row = params["a"]            # [1, E]
    wout = params["wout"]          # [E, O]  (Linear weight transposed)
    bout = params["bout"]          # [1, O]
    P, E = emb.shape
    O = wout.shape[1]

    if b_tile is None:
        # Two parallel blocks -> both v7x TensorCores get work; on single-TC
        # v5e/v6e the extra grid step is ~0.35us (pass b_tile=B for grid=1).
        b_tile = max(1, -(-B // 2))

    # Fold W into the embedding table (tanh(W c) == tanh((emb @ W^T)[ids])).
    emb_w = (emb @ W.T).astype(weights_dtype)                  # [P, E]
    wout_c = wout.astype(weights_dtype)

    # Pad batch to a multiple of b_tile; padded rows use path id 0 and are
    # sliced off below.  Ship path ids as a [g, b_tile*L, 1] column so the
    # kernel builds the one-hot directly in [M, P] orientation.
    g = -(-B // b_tile)
    pad = g * b_tile - B
    paths_p = jnp.pad(paths.astype(jnp.int32), ((0, pad), (0, 0)))
    paths3 = paths_p.reshape(g, b_tile * L, 1)

    out = pl.pallas_call(
        _code2vec_kernel,
        out_shape=jax.ShapeDtypeStruct((g * b_tile, O), jnp.float32),
        grid_spec=pltpu.PrefetchScalarGridSpec(
            num_scalar_prefetch=0,
            grid=(g,),
            in_specs=[
                pl.BlockSpec((1, b_tile * L, 1), lambda i: (i, 0, 0)),  # path ids
                pl.BlockSpec((P, E), lambda i: (0, 0)),   # emb @ W^T (resident)
                pl.BlockSpec((1, E), lambda i: (0, 0)),   # attention vector a
                pl.BlockSpec((E, O), lambda i: (0, 0)),   # output weight^T
                pl.BlockSpec((1, O), lambda i: (0, 0)),   # output bias
            ],
            out_specs=pl.BlockSpec((b_tile, O), lambda i: (i, 0)),
        ),
        compiler_params=pltpu.CompilerParams(
            dimension_semantics=("parallel",)),
    )(paths3, emb_w, a_row, wout_c, bout)

    return out[:B]


def _reference_forward(paths, params):
    """Plain-JAX mirror of the PyTorch forward for a correctness check."""
    emb, W, a_row, wout, bout = (params["emb"], params["W"], params["a"],
                                 params["wout"], params["bout"])
    c = emb[paths]                                 # [B, L, E]
    x = jnp.tanh(jnp.einsum("ij,blj->bli", W, c))  # tanh(bmm(W, c^T))^T
    s = jnp.einsum("ble,e->bl", x, a_row[0])       # [B, L]
    z = jax.nn.softmax(s, axis=1)                  # [B, L]
    v = jnp.einsum("ble,bl->be", x, z)             # [B, E]
    logits = v @ wout + bout                       # [B, O]
    return jax.nn.softmax(logits, axis=1)


if __name__ == "__main__":
    # Module hyper-params (small, consistent with the forward pass).
    nodes_dim = 48       # unused by forward (starts/ends ignored)
    paths_dim = 64       # P
    embedding_dim = 32   # E
    output_dim = 8       # O
    B, L = 32, 8         # 32 samples, 8 paths each -> 2 grid steps of 16
    # NOTE: dropout from the module is a no-op in this forward (never applied).

    key = jax.random.PRNGKey(0)
    k_emb, k_W, k_a, k_wout, k_bout, k_s, k_p, k_e = jax.random.split(key, 8)

    # Deterministic parameter init (synthetic; mirrors __init__ shapes).
    emb = jax.random.normal(k_emb, (paths_dim, embedding_dim), jnp.float32)
    W = jax.random.normal(k_W, (embedding_dim, embedding_dim), jnp.float32)
    a_row = jax.random.normal(k_a, (1, embedding_dim), jnp.float32)  # torch a: [1,E,1]
    bound = 1.0 / jnp.sqrt(embedding_dim)
    wout_t = jax.random.uniform(k_wout, (output_dim, embedding_dim), jnp.float32,
                                -bound, bound)          # torch Linear weight [O,E]
    bout = jax.random.uniform(k_bout, (output_dim,), jnp.float32, -bound, bound)

    params = {
        "emb": emb,
        "W": W,
        "a": a_row,
        "wout": wout_t.T,                 # [E, O] for v @ W^T
        "bout": bout.reshape(1, output_dim),
    }

    # Example integer inputs.
    starts = jax.random.randint(k_s, (B, L), 0, nodes_dim, jnp.int32)
    paths = jax.random.randint(k_p, (B, L), 0, paths_dim, jnp.int32)
    ends = jax.random.randint(k_e, (B, L), 0, nodes_dim, jnp.int32)

    ref = _reference_forward(paths, params)

    # 1) f32 MXU operands: tight check against the PyTorch-equivalent reference.
    fwd_f32 = jax.jit(functools.partial(code2vec_forward,
                                        weights_dtype=jnp.float32))
    out_f32 = jax.block_until_ready(fwd_f32(starts, paths, ends, params))
    assert out_f32.shape == (B, output_dim)
    assert jnp.allclose(out_f32, ref, atol=1e-3, rtol=1e-3), (out_f32, ref)
    assert jnp.allclose(jnp.sum(out_f32, axis=1), 1.0, atol=1e-4)

    # 2) default bf16 MXU fast path: loose elementwise check (emb@W^T is
    #    rounded to bf16 before tanh), exact row normalization preserved.
    fwd_bf16 = jax.jit(code2vec_forward)
    out_bf16 = jax.block_until_ready(fwd_bf16(starts, paths, ends, params))
    assert out_bf16.shape == (B, output_dim)
    assert jnp.all(jnp.isfinite(out_bf16))
    assert jnp.allclose(out_bf16, ref, atol=5e-2), (out_bf16, ref)
    assert jnp.allclose(jnp.sum(out_bf16, axis=1), 1.0, atol=1e-3)

    print("KERNEL_OK")
</pallas_src>

<mosaic_0001>
module attributes {stable_mosaic.version = 11 : i64} {
  func.func @_code2vec_kernel(%arg0: i32, %arg1: memref<1x128x1xi32, #tpu.memory_space<vmem>>, %arg2: memref<64x32xf32, #tpu.memory_space<vmem>>, %arg3: memref<1x32xf32, #tpu.memory_space<vmem>>, %arg4: memref<32x8xf32, #tpu.memory_space<vmem>>, %arg5: memref<1x8xf32, #tpu.memory_space<vmem>>, %arg6: memref<16x8xf32, #tpu.memory_space<vmem>>) attributes {dimension_semantics = [#tpu.dimension_semantics<parallel>], iteration_bounds = array<i64: 2>, scalar_prefetch = 0 : i64, scratch_operands = 0 : i64, tpu.core_type = #tpu.core_type<tc>, window_params = [{transform_indices = @transform_0, window_bounds = array<i64: 1, 128, 1>}, {pipeline_mode = #tpu.pipeline_mode<synchronous>, transform_indices = @transform_1, window_bounds = array<i64: 64, 32>}, {pipeline_mode = #tpu.pipeline_mode<synchronous>, transform_indices = @transform_2, window_bounds = array<i64: 1, 32>}, {pipeline_mode = #tpu.pipeline_mode<synchronous>, transform_indices = @transform_3, window_bounds = array<i64: 32, 8>}, {pipeline_mode = #tpu.pipeline_mode<synchronous>, transform_indices = @transform_4, window_bounds = array<i64: 1, 8>}, {transform_indices = @transform_5, window_bounds = array<i64: 16, 8>}]} {
    %c0 = arith.constant 0 : index
    %c0_0 = arith.constant 0 : index
    %c0_1 = arith.constant 0 : index
    %0 = vector.load %arg1[%c0, %c0_0, %c0_1] : memref<1x128x1xi32, #tpu.memory_space<vmem>>, vector<1x128x1xi32>
    %1 = vector.shape_cast %0 : vector<1x128x1xi32> to vector<128x1xi32>
    %2 = tpu.iota {dimensions = array<i32: 1>} : vector<128x64xi32>
    %3 = vector.broadcast %1 : vector<128x1xi32> to vector<128x64xi32>
    %4 = arith.cmpi eq, %2, %3 : vector<128x64xi32>
    %5 = arith.extui %4 : vector<128x64xi1> to vector<128x64xi32>
    %6 = arith.sitofp %5 : vector<128x64xi32> to vector<128x64xf32>
    %c0_2 = arith.constant 0 : index
    %c0_3 = arith.constant 0 : index
    %7 = vector.load %arg2[%c0_2, %c0_3] : memref<64x32xf32, #tpu.memory_space<vmem>>, vector<64x32xf32>
    %cst = arith.constant dense<0.000000e+00> : vector<128x32xf32>
    %8 = tpu.matmul %6, %7, %cst {dimension_numbers = #tpu.dot_dimension_numbers<[1], [0], [0], [1], [0, 0, 1, 1], [], []>} : vector<128x64xf32>, vector<64x32xf32>, vector<128x32xf32> -> vector<128x32xf32>
    %9 = math.tanh %8 : vector<128x32xf32>
    %10 = vector.shape_cast %9 : vector<128x32xf32> to vector<16x8x32xf32>
    %c0_4 = arith.constant 0 : index
    %c0_5 = arith.constant 0 : index
    %11 = vector.load %arg3[%c0_4, %c0_5] : memref<1x32xf32, #tpu.memory_space<vmem>>, vector<1x32xf32>
    %12 = vector.shape_cast %11 : vector<1x32xf32> to vector<1x1x32xf32>
    %13 = vector.broadcast %12 : vector<1x1x32xf32> to vector<16x8x32xf32>
    %14 = arith.mulf %10, %13 : vector<16x8x32xf32>
    %cst_6 = arith.constant dense<0.000000e+00> : vector<16x8xf32>
    %15 = vector.multi_reduction <add>, %14, %cst_6 [2] : vector<16x8x32xf32> to vector<16x8xf32>
    %16 = vector.shape_cast %15 : vector<16x8xf32> to vector<16x8x1xf32>
    %cst_7 = arith.constant dense<0xFF800000> : vector<16x1xf32>
    %17 = vector.multi_reduction <maximumf>, %16, %cst_7 [1] : vector<16x8x1xf32> to vector<16x1xf32>
    %18 = vector.shape_cast %17 : vector<16x1xf32> to vector<16x1x1xf32>
    %19 = vector.broadcast %18 : vector<16x1x1xf32> to vector<16x8x1xf32>
    %20 = arith.subf %16, %19 : vector<16x8x1xf32>
    %21 = math.exp %20 : vector<16x8x1xf32>
    %cst_8 = arith.constant dense<0.000000e+00> : vector<16x1xf32>
    %22 = vector.multi_reduction <add>, %21, %cst_8 [1] : vector<16x8x1xf32> to vector<16x1xf32>
    %23 = vector.shape_cast %22 : vector<16x1xf32> to vector<16x1x1xf32>
    %24 = vector.broadcast %23 : vector<16x1x1xf32> to vector<16x8x1xf32>
    %25 = arith.divf %21, %24 : vector<16x8x1xf32>
    %26 = vector.broadcast %25 : vector<16x8x1xf32> to vector<16x8x32xf32>
    %27 = arith.mulf %10, %26 : vector<16x8x32xf32>
    %cst_9 = arith.constant dense<0.000000e+00> : vector<16x32xf32>
    %28 = vector.multi_reduction <add>, %27, %cst_9 [1] : vector<16x8x32xf32> to vector<16x32xf32>
    %c0_10 = arith.constant 0 : index
    %c0_11 = arith.constant 0 : index
    %29 = vector.load %arg4[%c0_10, %c0_11] : memref<32x8xf32, #tpu.memory_space<vmem>>, vector<32x8xf32>
    %cst_12 = arith.constant dense<0.000000e+00> : vector<16x8xf32>
    %30 = tpu.matmul %28, %29, %cst_12 {dimension_numbers = #tpu.dot_dimension_numbers<[1], [0], [0], [1], [0, 0, 1, 1], [], []>} : vector<16x32xf32>, vector<32x8xf32>, vector<16x8xf32> -> vector<16x8xf32>
    %c0_13 = arith.constant 0 : index
    %c0_14 = arith.constant 0 : index
    %31 = vector.load %arg5[%c0_13, %c0_14] : memref<1x8xf32, #tpu.memory_space<vmem>>, vector<1x8xf32>
    %32 = vector.broadcast %31 : vector<1x8xf32> to vector<16x8xf32>
    %33 = arith.addf %30, %32 : vector<16x8xf32>
    %cst_15 = arith.constant dense<0xFF800000> : vector<16xf32>
    %34 = vector.multi_reduction <maximumf>, %33, %cst_15 [1] : vector<16x8xf32> to vector<16xf32>
    %35 = vector.shape_cast %34 : vector<16xf32> to vector<16x1xf32>
    %36 = vector.broadcast %35 : vector<16x1xf32> to vector<16x8xf32>
    %37 = arith.subf %33, %36 : vector<16x8xf32>
    %38 = math.exp %37 : vector<16x8xf32>
    %cst_16 = arith.constant dense<0.000000e+00> : vector<16xf32>
    %39 = vector.multi_reduction <add>, %38, %cst_16 [1] : vector<16x8xf32> to vector<16xf32>
    %40 = vector.shape_cast %39 : vector<16xf32> to vector<16x1xf32>
    %41 = vector.broadcast %40 : vector<16x1xf32> to vector<16x8xf32>
    %42 = arith.divf %38, %41 : vector<16x8xf32>
    %c0_17 = arith.constant 0 : index
    %c0_18 = arith.constant 0 : index
    %43 = vector.load %arg6[%c0_17, %c0_18] : memref<16x8xf32, #tpu.memory_space<vmem>>, vector<16x8xf32>
    tpu.vector_store %arg6[%c0_17, %c0_18], %42 {strides = array<i32>} : memref<16x8xf32, #tpu.memory_space<vmem>>, vector<16x8xf32>,
    return
  }
  func.func @transform_0(%arg0: i32) -> (i32, i32, i32) {
    %c0_i32 = arith.constant 0 : i32
    %c0_i32_0 = arith.constant 0 : i32
    %c0_i32_1 = arith.constant 0 : i32
    return %arg0, %c0_i32, %c0_i32_0 : i32, i32, i32
  }
  func.func @transform_1(%arg0: i32) -> (i32, i32) {
    %c0_i32 = arith.constant 0 : i32
    %c0_i32_0 = arith.constant 0 : i32
    %c0_i32_1 = arith.constant 0 : i32
    return %c0_i32, %c0_i32_0 : i32, i32
  }
  func.func @transform_2(%arg0: i32) -> (i32, i32) {
    %c0_i32 = arith.constant 0 : i32
    %c0_i32_0 = arith.constant 0 : i32
    %c0_i32_1 = arith.constant 0 : i32
    return %c0_i32, %c0_i32_0 : i32, i32
  }
  func.func @transform_3(%arg0: i32) -> (i32, i32) {
    %c0_i32 = arith.constant 0 : i32
    %c0_i32_0 = arith.constant 0 : i32
    %c0_i32_1 = arith.constant 0 : i32
    return %c0_i32, %c0_i32_0 : i32, i32
  }
  func.func @transform_4(%arg0: i32) -> (i32, i32) {
    %c0_i32 = arith.constant 0 : i32
    %c0_i32_0 = arith.constant 0 : i32
    %c0_i32_1 = arith.constant 0 : i32
    return %c0_i32, %c0_i32_0 : i32, i32
  }
  func.func @transform_5(%arg0: i32) -> (i32, i32) {
    %c0_i32 = arith.constant 0 : i32
    %c0_i32_0 = arith.constant 0 : i32
    return %arg0, %c0_i32 : i32, i32
  }
}

</mosaic_0001>

<llo_original>
// kernel: code2vec_forward.1
$region0: #{code2vec_forward.1}
  #allocation0 [shape = 'u32[]', space=smem, size = 0x4, offset = 0x4, fixed_abs, tag = 'smem constant byte address 0x4 - core index']
  #allocation1 [shape = 'u32[144,128]{1,0:T(1,128)}', space=vmem, size = 0x12000, scoped, tag = 'internal scratch']
  %s0 = inlined_call_operand.vmem [shape: s32[2,128,1], index: 0, kind: input, shape index: {}]
  %s1 = inlined_call_operand.vmem [shape: f32[64,32], index: 1, kind: input, shape index: {}]
  %s2 = inlined_call_operand.vmem [shape: f32[1,32], index: 2, kind: input, shape index: {}]
  %s3 = inlined_call_operand.vmem [shape: f32[32,8], index: 3, kind: input, shape index: {}]
  %s4 = inlined_call_operand.vmem [shape: f32[1,8], index: 4, kind: input, shape index: {}]
  %s5 = inlined_call_operand.vmem [shape: f32[32,8], index: 5, kind: output, shape index: {}]
  %s6 = sld [smem:[#allocation0]]
  $region53: #{code2vec_forward.1} parent=0
    _
  %s8 = ssub.s32 1, %s6
  %s9 = scalar_select 0, %s8, %s6
  loop: start=0, step=1, limit=4
  $region2: #{code2vec_forward.1} parent=0 // loop_pre_header
    _
  $region3: #{code2vec_forward.1} parent=0 // loop_header
    %s11 = sphi 0, %s15
    %p12 = scmp.ge.s32.totalorder %s11, 4
    %s21 = sphi 0, %s23
    %s24 = sphi 0, %s21
    %s25 = sphi 0, %s24
    %s41 = sphi 0, %s25
    %s45 = sphi 0, %s45
    %s47 = sphi 0, %s45
    %s48 = sphi 0, %s47
    %s62 = sphi 0, %s48
    %s66 = sphi 0, %s66
    %s68 = sphi 0, %s66
    %s69 = sphi 0, %s68
    %s83 = sphi 0, %s69
    %s87 = sphi 0, %s87
    %s89 = sphi 0, %s87
    %s90 = sphi 0, %s89
    %s104 = sphi 0, %s90
    %s108 = sphi 0, %s108
    %s110 = sphi 0, %s108
    %s111 = sphi 0, %s110
    %s125 = sphi 0, %s111
    %s131 = sphi 0, %s133
    %s134 = sphi 0, %s131
    %s135 = sphi 0, %s134
    %s151 = sphi 0, %s135
  $region4: #{code2vec_forward.1} parent=0 // loop_header_branch
    %14 = sbr.rel (%p12) target = $region8
  $region5: #{code2vec_forward.1} parent=0 // loop_body
    %s16 = ssub.s32 %s11, 1
    %s17 = ssub.s32 %s11, 2
    %s18 = sadd.s32 %s11, 1
    %s19 = ssub.s32 %s11, %s18
    %p20 = scmp.eq.s32.totalorder %s19, 0
    %s22 = sadd.s32 %s21, 1
    %s23 = scalar_select %p20, %s21, %s22
    %p26 = pneg %p20
    %p27 = scmp.eq.s32.totalorder %s11, 1
    %p28 = por %p26, %p27
    %p29 = scmp.ne.s32.totalorder %s21, %s24
    %p30 = scmp.eq.s32.totalorder %s11, 0
    %p31 = por %p29, %p30
    %p32 = scmp.ne.s32.totalorder %s21, %s24
    %p33 = scmp.eq.s32.totalorder %s16, 1
    %p34 = por %p32, %p33
    %p35 = scmp.ne.s32.totalorder %s24, %s25
    %p36 = scmp.eq.s32.totalorder %s16, 0
    %p37 = por %p35, %p36
    %p38 = scmp.ne.s32.totalorder %s24, %s25
    %p39 = scmp.eq.s32.totalorder %s17, 1
    %p40 = por %p38, %p39
    %p42 = scmp.ne.s32.totalorder %s25, %s41
    %p43 = scmp.eq.s32.totalorder %s17, 0
    %p44 = por %p42, %p43
    %s46 = sadd.s32 %s45, 1
    %p49 = scmp.eq.s32.totalorder %s11, 1
    %p50 = scmp.ne.s32.totalorder %s45, %s47
    %p51 = scmp.eq.s32.totalorder %s11, 0
    %p52 = por %p50, %p51
    %p53 = scmp.ne.s32.totalorder %s45, %s47
    %p54 = scmp.eq.s32.totalorder %s16, 1
    %p55 = por %p53, %p54
    %p56 = scmp.ne.s32.totalorder %s47, %s48
    %p57 = scmp.eq.s32.totalorder %s16, 0
    %p58 = por %p56, %p57
    %p59 = scmp.ne.s32.totalorder %s47, %s48
    %p60 = scmp.eq.s32.totalorder %s17, 1
    %p61 = por %p59, %p60
    %p63 = scmp.ne.s32.totalorder %s48, %s62
    %p64 = scmp.eq.s32.totalorder %s17, 0
    %p65 = por %p63, %p64
    %s67 = sadd.s32 %s66, 1
    %p70 = scmp.eq.s32.totalorder %s11, 1
    %p71 = scmp.ne.s32.totalorder %s66, %s68
    %p72 = scmp.eq.s32.totalorder %s11, 0
    %p73 = por %p71, %p72
    %p74 = scmp.ne.s32.totalorder %s66, %s68
    %p75 = scmp.eq.s32.totalorder %s16, 1
    %p76 = por %p74, %p75
    %p77 = scmp.ne.s32.totalorder %s68, %s69
    %p78 = scmp.eq.s32.totalorder %s16, 0
    %p79 = por %p77, %p78
    %p80 = scmp.ne.s32.totalorder %s68, %s69
    %p81 = scmp.eq.s32.totalorder %s17, 1
    %p82 = por %p80, %p81
    %p84 = scmp.ne.s32.totalorder %s69, %s83
    %p85 = scmp.eq.s32.totalorder %s17, 0
    %p86 = por %p84, %p85
    %s88 = sadd.s32 %s87, 1
    %p91 = scmp.eq.s32.totalorder %s11, 1
    %p92 = scmp.ne.s32.totalorder %s87, %s89
    %p93 = scmp.eq.s32.totalorder %s11, 0
    %p94 = por %p92, %p93
    %p95 = scmp.ne.s32.totalorder %s87, %s89
    %p96 = scmp.eq.s32.totalorder %s16, 1
    %p97 = por %p95, %p96
    %p98 = scmp.ne.s32.totalorder %s89, %s90
    %p99 = scmp.eq.s32.totalorder %s16, 0
    %p100 = por %p98, %p99
    %p101 = scmp.ne.s32.totalorder %s89, %s90
    %p102 = scmp.eq.s32.totalorder %s17, 1
    %p103 = por %p101, %p102
    %p105 = scmp.ne.s32.totalorder %s90, %s104
    %p106 = scmp.eq.s32.totalorder %s17, 0
    %p107 = por %p105, %p106
    %s109 = sadd.s32 %s108, 1
    %p112 = scmp.eq.s32.totalorder %s11, 1
    %p113 = scmp.ne.s32.totalorder %s108, %s110
    %p114 = scmp.eq.s32.totalorder %s11, 0
    %p115 = por %p113, %p114
    %p116 = scmp.ne.s32.totalorder %s108, %s110
    %p117 = scmp.eq.s32.totalorder %s16, 1
    %p118 = por %p116, %p117
    %p119 = scmp.ne.s32.totalorder %s110, %s111
    %p120 = scmp.eq.s32.totalorder %s16, 0
    %p121 = por %p119, %p120
    %p122 = scmp.ne.s32.totalorder %s110, %s111
    %p123 = scmp.eq.s32.totalorder %s17, 1
    %p124 = por %p122, %p123
    %p126 = scmp.ne.s32.totalorder %s111, %s125
    %p127 = scmp.eq.s32.totalorder %s17, 0
    %p128 = por %p126, %p127
    %s129 = ssub.s32 %s11, %s18
    %p130 = scmp.eq.s32.totalorder %s129, 0
    %s132 = sadd.s32 %s131, 1
    %s133 = scalar_select %p130, %s131, %s132
    %p136 = pneg %p130
    %p137 = scmp.eq.s32.totalorder %s11, 1
    %p138 = por %p136, %p137
    %p139 = scmp.ne.s32.totalorder %s131, %s134
    %p140 = scmp.eq.s32.totalorder %s11, 0
    %p141 = por %p139, %p140
    %p142 = scmp.ne.s32.totalorder %s131, %s134
    %p143 = scmp.eq.s32.totalorder %s16, 1
    %p144 = por %p142, %p143
    %p145 = scmp.ne.s32.totalorder %s134, %s135
    %p146 = scmp.eq.s32.totalorder %s16, 0
    %p147 = por %p145, %p146
    %p148 = scmp.ne.s32.totalorder %s134, %s135
    %p149 = scmp.eq.s32.totalorder %s17, 1
    %p150 = por %p148, %p149
    %p152 = scmp.ne.s32.totalorder %s135, %s151
    %p153 = scmp.eq.s32.totalorder %s17, 0
    %p154 = por %p152, %p153
    %p155 = scmp.le.s32.totalorder 1, %s11
    %p156 = scmp.lt.s32.totalorder %s11, 3
    %p157 = pnand %p155, %p156
    %p158 = pneg %p157
    // Predicated region
    $region9: #{code2vec_forward.1} parent=5 // pred_check
      _
    $region10: #{code2vec_forward.1} parent=5 // pred_check_branch
      %160 = sbr.rel (%p157) target = $region12
    $region11: #{code2vec_forward.1} parent=5 // pred_region
      %s161 = ssub.s32 %s11, 1
      // Predicated region
      $region13: #{code2vec_forward.1} parent=11 // pred_check
        %p162 = pneg %p58
      $region14: #{code2vec_forward.1} parent=11 // pred_check_branch
        %164 = sbr.rel (%p162) target = $region16
      $region15: #{code2vec_forward.1} parent=11 // pred_region
        _
      $region16: #{code2vec_forward.1} parent=11 // pred_fallthru
        _
      // Predicated region
      $region17: #{code2vec_forward.1} parent=11 // pred_check
        %p165 = pneg %p79
      $region18: #{code2vec_forward.1} parent=11 // pred_check_branch
        %167 = sbr.rel (%p165) target = $region20
      $region19: #{code2vec_forward.1} parent=11 // pred_region
        _
      $region20: #{code2vec_forward.1} parent=11 // pred_fallthru
        _
      // Predicated region
      $region21: #{code2vec_forward.1} parent=11 // pred_check
        %p168 = pneg %p100
      $region22: #{code2vec_forward.1} parent=11 // pred_check_branch
        %170 = sbr.rel (%p168) target = $region24
      $region23: #{code2vec_forward.1} parent=11 // pred_region
        _
      $region24: #{code2vec_forward.1} parent=11 // pred_fallthru
        _
      // Predicated region
      $region25: #{code2vec_forward.1} parent=11 // pred_check
        %p171 = pneg %p121
      $region26: #{code2vec_forward.1} parent=11 // pred_check_branch
        %173 = sbr.rel (%p171) target = $region28
      $region27: #{code2vec_forward.1} parent=11 // pred_region
        _
      $region28: #{code2vec_forward.1} parent=11 // pred_fallthru
        _
    $region12: #{code2vec_forward.1} parent=5 // pred_fallthru
      _
    %p174 = scmp.lt.s32.totalorder %s11, 2
    // Predicated region
    $region29: #{code2vec_forward.1} parent=5 // pred_check
      %p175 = pneg %p174
    $region30: #{code2vec_forward.1} parent=5 // pred_check_branch
      %177 = sbr.rel (%p175) target = $region32
    $region31: #{code2vec_forward.1} parent=5 // pred_region
      // Predicated region
      $region33: #{code2vec_forward.1} parent=31 // pred_check
        %p178 = pneg %p31
      $region34: #{code2vec_forward.1} parent=31 // pred_check_branch
        %180 = sbr.rel (%p178) target = $region36
      $region35: #{code2vec_forward.1} parent=31 // pred_region
        %p181 = scmp.lt.s32.totalorder %s11, 1
        %s182 = scalar_select %p181, %s11, 1
        %s183 = smul.addr %s182, 16
        %s184 = smul.addr %s183, 8
        %s185 = scalar_lea.vmem %s0, %s184
      $region36: #{code2vec_forward.1} parent=31 // pred_fallthru
        _
    $region32: #{code2vec_forward.1} parent=5 // pred_fallthru
      _
    %p186 = scmp.le.s32.totalorder 1, %s11
    %p187 = scmp.lt.s32.totalorder %s11, 3
    %p188 = pnand %p186, %p187
    %p189 = pneg %p188
    // Predicated region
    $region37: #{code2vec_forward.1} parent=5 // pred_check
      _
    $region38: #{code2vec_forward.1} parent=5 // pred_check_branch
      %191 = sbr.rel (%p188) target = $region40
    $region39: #{code2vec_forward.1} parent=5 // pred_region
      %s192 = ssub.s32 %s11, 1
      %p193 = scmp.lt.s32.totalorder %s16, 1
      %s194 = scalar_select %p193, %s16, 1
      %s195 = smul.addr %s194, 16
      %s196 = smul.addr %s195, 8
      %s197 = scalar_lea.vmem %s0, %s196
      %p198 = pneg %p37
      %p199 = pneg %p34
      %p200 = pneg %p58
      %p201 = pneg %p55
      %p202 = pneg %p79
      %p203 = pneg %p76
      %p204 = pneg %p100
      %p205 = pneg %p97
      %p206 = pneg %p121
      %p207 = pneg %p118
      %p208 = pneg %p147
      %p209 = pneg %p144
      %s210 = smul.u32 2, %s16
      %p211 = scmp.lt.s32.totalorder %s210, 3
      %s212 = scalar_select %p211, %s210, 3
      %s213 = smul.addr %s212, 8
      %s214 = scalar_lea.vmem %s5, %s213
      %p215 = scmp.lt.s32.totalorder %s16, 1
      %s216 = scalar_select %p215, %s16, 1
      %s217 = smul.addr %s216, 16
      %s218 = smul.addr %s217, 8
      %s219 = scalar_lea.vmem %s0, %s218
      %s220 = smul.u32 2, %s16
      %p221 = scmp.lt.s32.totalorder %s220, 3
      %s222 = scalar_select %p221, %s220, 3
      %s223 = smul.addr %s222, 8
      %s224 = scalar_lea.vmem %s5, %s223
      %s225 = smul.u32 2, %s16
      %v226 = vld [vmem:[%s219] sm:$0xff]
      %v227 = vld [vmem:[%s219 + $0x8] sm:$0xff]
      %v228 = vld [vmem:[%s219 + $0x10] sm:$0xff]
      %v229 = vld [vmem:[%s219 + $0x18] sm:$0xff]
      %v230 = vld [vmem:[%s219 + $0x20] sm:$0xff]
      %v231 = vld [vmem:[%s219 + $0x28] sm:$0xff]
      %v232 = vld [vmem:[%s219 + $0x30] sm:$0xff]
      %v233 = vld [vmem:[%s219 + $0x38] sm:$0xff]
      %v234 = vld [vmem:[%s219 + $0x40] sm:$0xff]
      %v235 = vld [vmem:[%s219 + $0x48] sm:$0xff]
      %v236 = vld [vmem:[%s219 + $0x50] sm:$0xff]
      %v237 = vld [vmem:[%s219 + $0x58] sm:$0xff]
      %v238 = vld [vmem:[%s219 + $0x60] sm:$0xff]
      %v239 = vld [vmem:[%s219 + $0x68] sm:$0xff]
      %v240 = vld [vmem:[%s219 + $0x70] sm:$0xff]
      %v241 = vld [vmem:[%s219 + $0x78] sm:$0xff]
      %v242 = vlaneseq
      %v243 = vand.u32 %v242, 127
      %244 = vset.pattern.permute.xlu0 0
      %245 = vperm.xlu0 %244, %v226
      %v246 = vpop.permute.xlu0 %245
      %247 = vset.pattern.permute.xlu0 0
      %248 = vperm.xlu0 %247, %v227
      %v249 = vpop.permute.xlu0 %248
      %250 = vset.pattern.permute.xlu0 0
      %251 = vperm.xlu0 %250, %v228
      %v252 = vpop.permute.xlu0 %251
      %253 = vset.pattern.permute.xlu0 0
      %254 = vperm.xlu0 %253, %v229
      %v255 = vpop.permute.xlu0 %254
      %256 = vset.pattern.permute.xlu0 0
      %257 = vperm.xlu0 %256, %v230
      %v258 = vpop.permute.xlu0 %257
      %259 = vset.pattern.permute.xlu0 0
      %260 = vperm.xlu0 %259, %v231
      %v261 = vpop.permute.xlu0 %260
      %262 = vset.pattern.permute.xlu0 0
      %263 = vperm.xlu0 %262, %v232
      %v264 = vpop.permute.xlu0 %263
      %265 = vset.pattern.permute.xlu0 0
      %266 = vperm.xlu0 %265, %v233
      %v267 = vpop.permute.xlu0 %266
      %268 = vset.pattern.permute.xlu0 0
      %269 = vperm.xlu0 %268, %v234
      %v270 = vpop.permute.xlu0 %269
      %271 = vset.pattern.permute.xlu0 0
      %272 = vperm.xlu0 %271, %v235
      %v273 = vpop.permute.xlu0 %272
      %274 = vset.pattern.permute.xlu0 0
      %275 = vperm.xlu0 %274, %v236
      %v276 = vpop.permute.xlu0 %275
      %277 = vset.pattern.permute.xlu0 0
      %278 = vperm.xlu0 %277, %v237
      %v279 = vpop.permute.xlu0 %278
      %280 = vset.pattern.permute.xlu0 0
      %281 = vperm.xlu0 %280, %v238
      %v282 = vpop.permute.xlu0 %281
      %283 = vset.pattern.permute.xlu0 0
      %284 = vperm.xlu0 %283, %v239
      %v285 = vpop.permute.xlu0 %284
      %286 = vset.pattern.permute.xlu0 0
      %287 = vperm.xlu0 %286, %v240
      %v288 = vpop.permute.xlu0 %287
      %289 = vset.pattern.permute.xlu0 0
      %290 = vperm.xlu0 %289, %v241
      %v291 = vpop.permute.xlu0 %290
      %vm292 = vcmp.eq.s32.totalorder %v243, %v246
      %vm293 = vcmp.eq.s32.totalorder %v243, %v249
      %vm294 = vcmp.eq.s32.totalorder %v243, %v252
      %vm295 = vcmp.eq.s32.totalorder %v243, %v255
      %vm296 = vcmp.eq.s32.totalorder %v243, %v258
      %vm297 = vcmp.eq.s32.totalorder %v243, %v261
      %vm298 = vcmp.eq.s32.totalorder %v243, %v264
      %vm299 = vcmp.eq.s32.totalorder %v243, %v267
      %vm300 = vcmp.eq.s32.totalorder %v243, %v270
      %vm301 = vcmp.eq.s32.totalorder %v243, %v273
      %vm302 = vcmp.eq.s32.totalorder %v243, %v276
      %vm303 = vcmp.eq.s32.totalorder %v243, %v279
      %vm304 = vcmp.eq.s32.totalorder %v243, %v282
      %vm305 = vcmp.eq.s32.totalorder %v243, %v285
      %vm306 = vcmp.eq.s32.totalorder %v243, %v288
      %vm307 = vcmp.eq.s32.totalorder %v243, %v291
      %v308 = vsel %vm292, 1, 0
      %v309 = vsel %vm293, 1, 0
      %v310 = vsel %vm294, 1, 0
      %v311 = vsel %vm295, 1, 0
      %v312 = vsel %vm296, 1, 0
      %v313 = vsel %vm297, 1, 0
      %v314 = vsel %vm298, 1, 0
      %v315 = vsel %vm299, 1, 0
      %v316 = vsel %vm300, 1, 0
      %v317 = vsel %vm301, 1, 0
      %v318 = vsel %vm302, 1, 0
      %v319 = vsel %vm303, 1, 0
      %v320 = vsel %vm304, 1, 0
      %v321 = vsel %vm305, 1, 0
      %v322 = vsel %vm306, 1, 0
      %v323 = vsel %vm307, 1, 0
      %v324 = vcvt.s32.f32 %v308
      %v325 = vcvt.s32.f32 %v309
      %v326 = vcvt.s32.f32 %v310
      %v327 = vcvt.s32.f32 %v311
      %v328 = vcvt.s32.f32 %v312
      %v329 = vcvt.s32.f32 %v313
      %v330 = vcvt.s32.f32 %v314
      %v331 = vcvt.s32.f32 %v315
      %v332 = vcvt.s32.f32 %v316
      %v333 = vcvt.s32.f32 %v317
      %v334 = vcvt.s32.f32 %v318
      %v335 = vcvt.s32.f32 %v319
      %v336 = vcvt.s32.f32 %v320
      %v337 = vcvt.s32.f32 %v321
      %v338 = vcvt.s32.f32 %v322
      %v339 = vcvt.s32.f32 %v323
      %v340 = vld [vmem:[%s1] sm:$0xff]
      %v341 = vld [vmem:[%s1 + $0x8] sm:$0xff]
      %v342 = vld [vmem:[%s1 + $0x10] sm:$0xff]
      %v343 = vld [vmem:[%s1 + $0x18] sm:$0xff]
      %v344 = vld [vmem:[%s1 + $0x20] sm:$0xff]
      %v345 = vld [vmem:[%s1 + $0x28] sm:$0xff]
      %v346 = vld [vmem:[%s1 + $0x30] sm:$0xff]
      %v347 = vld [vmem:[%s1 + $0x38] sm:$0xff]
      %vm348 = vcmask 523264
      %v350 = vsel %vm348, %v324, 0
      %v353 = vsel %vm348, %v325, 0
      %v356 = vsel %vm348, %v326, 0
      %v359 = vsel %vm348, %v327, 0
      %v362 = vsel %vm348, %v328, 0
      %v365 = vsel %vm348, %v329, 0
      %v368 = vsel %vm348, %v330, 0
      %v371 = vsel %vm348, %v331, 0
      %v374 = vsel %vm348, %v332, 0
      %v377 = vsel %vm348, %v333, 0
      %v380 = vsel %vm348, %v334, 0
      %v383 = vsel %vm348, %v335, 0
      %v386 = vsel %vm348, %v336, 0
      %v389 = vsel %vm348, %v337, 0
      %v392 = vsel %vm348, %v338, 0
      %v395 = vsel %vm348, %v339, 0
      %397 = vmatprep.subr.mxu0 0.0
      %398 = vmatpush1.msra.mxu0 %v340
      %399 = vmatprep.subr.mxu0 0.0
      %400 = vmatpush1.msra.mxu0 %v341
      %401 = vmatprep.subr.mxu0 0.0
      %402 = vmatpush1.msra.mxu0 %v342
      %403 = vmatprep.subr.mxu0 0.0
      %404 = vmatpush1.msra.mxu0 %v343
      %405 = vmatprep.subr.mxu0 0.0
      %406 = vmatpush1.msra.mxu0 %v344
      %407 = vmatprep.subr.mxu0 0.0
      %408 = vmatpush1.msra.mxu0 %v345
      %409 = vmatprep.subr.mxu0 0.0
      %410 = vmatpush1.msra.mxu0 %v346
      %411 = vmatprep.subr.mxu0 0.0
      %412 = vmatpush1.msra.mxu0 %v347
      %413 = vmatprep.subr.mxu0 0.0
      %414 = vmatpush1.msra.mxu0 0.0
      %415 = vmatprep.subr.mxu0 0.0
      %416 = vmatpush1.msra.mxu0 0.0
      %417 = vmatprep.subr.mxu0 0.0
      %418 = vmatpush1.msra.mxu0 0.0
      %419 = vmatprep.subr.mxu0 0.0
      %420 = vmatpush1.msra.mxu0 0.0
      %421 = vmatprep.subr.mxu0 0.0
      %422 = vmatpush1.msra.mxu0 0.0
      %423 = vmatprep.subr.mxu0 0.0
      %424 = vmatpush1.msra.mxu0 0.0
      %425 = vmatprep.subr.mxu0 0.0
      %426 = vmatpush1.msra.mxu0 0.0
      %427 = vmatprep.subr.mxu0 0.0
      %428 = vmatpush1.msra.mxu0 0.0
      %429 = vmatprep.subr.mxu0 0.0
      %430 = vmatpush1.msra.mxu0 0.0
      %431 = vmatprep.subr.mxu0 0.0
      %432 = vmatpush1.msra.mxu0 0.0
      %433 = vmatprep.subr.mxu0 0.0
      %434 = vmatpush1.msra.mxu0 0.0
      %435 = vmatprep.subr.mxu0 0.0
      %436 = vmatpush1.msra.mxu0 0.0
      %437 = vmatprep.subr.mxu0 0.0
      %438 = vmatpush1.msra.mxu0 0.0
      %439 = vmatprep.subr.mxu0 0.0
      %440 = vmatpush1.msra.mxu0 0.0
      %441 = vmatprep.subr.mxu0 0.0
      %442 = vmatpush1.msra.mxu0 0.0
      %443 = vmatprep.subr.mxu0 0.0
      %444 = vmatpush1.msra.mxu0 0.0
      %445 = vmatprep.subr.mxu0 0.0
      %446 = vmatpush1.msra.mxu0 0.0
      %447 = vmatprep.subr.mxu0 0.0
      %448 = vmatpush1.msra.mxu0 0.0
      %449 = vmatprep.subr.mxu0 0.0
      %450 = vmatpush1.msra.mxu0 0.0
      %451 = vmatprep.subr.mxu0 0.0
      %452 = vmatpush1.msra.mxu0 0.0
      %453 = vmatprep.subr.mxu0 0.0
      %454 = vmatpush1.msra.mxu0 0.0
      %455 = vmatprep.subr.mxu0 0.0
      %456 = vmatpush1.msra.mxu0 0.0
      %457 = vmatprep.subr.mxu0 0.0
      %458 = vmatpush1.msra.mxu0 0.0
      %459 = vmatprep.subr.mxu0 0.0
      %460 = vmatpush1.msra.mxu0 0.0
      %461 = vmatprep.mubr.f32.mxu0 0.0
      %462 = vmatmul.mubr.f32.gmra.mrb[0].mxu0 %v350
      %v463 = vpop.f32.mrb[0].mxu0
      %v464 = vadd.f32 0.0, %v463
      %v465 = vpop.f32.mrb[0].mxu0
      %466 = vmatprep.mubr.f32.mxu0 0.0
      %467 = vmatmul.mubr.f32.gmra.mrb[0].mxu0 %v353
      %v468 = vpop.f32.mrb[0].mxu0
      %v469 = vadd.f32 0.0, %v468
      %v470 = vpop.f32.mrb[0].mxu0
      %471 = vmatprep.mubr.f32.mxu0 0.0
      %472 = vmatmul.mubr.f32.gmra.mrb[0].mxu0 %v356
      %v473 = vpop.f32.mrb[0].mxu0
      %v474 = vadd.f32 0.0, %v473
      %v475 = vpop.f32.mrb[0].mxu0
      %476 = vmatprep.mubr.f32.mxu0 0.0
      %477 = vmatmul.mubr.f32.gmra.mrb[0].mxu0 %v359
      %v478 = vpop.f32.mrb[0].mxu0
      %v479 = vadd.f32 0.0, %v478
      %v480 = vpop.f32.mrb[0].mxu0
      %481 = vmatprep.mubr.f32.mxu0 0.0
      %482 = vmatmul.mubr.f32.gmra.mrb[0].mxu0 %v362
      %v483 = vpop.f32.mrb[0].mxu0
      %v484 = vadd.f32 0.0, %v483
      %v485 = vpop.f32.mrb[0].mxu0
      %486 = vmatprep.mubr.f32.mxu0 0.0
      %487 = vmatmul.mubr.f32.gmra.mrb[0].mxu0 %v365
      %v488 = vpop.f32.mrb[0].mxu0
      %v489 = vadd.f32 0.0, %v488
      %v490 = vpop.f32.mrb[0].mxu0
      %491 = vmatprep.mubr.f32.mxu0 0.0
      %492 = vmatmul.mubr.f32.gmra.mrb[0].mxu0 %v368
      %v493 = vpop.f32.mrb[0].mxu0
      %v494 = vadd.f32 0.0, %v493
      %v495 = vpop.f32.mrb[0].mxu0
      %496 = vmatprep.mubr.f32.mxu0 0.0
      %497 = vmatmul.mubr.f32.gmra.mrb[0].mxu0 %v371
      %v498 = vpop.f32.mrb[0].mxu0
      %v499 = vadd.f32 0.0, %v498
      %v500 = vpop.f32.mrb[0].mxu0
      %501 = vmatprep.mubr.f32.mxu0 0.0
      %502 = vmatmul.mubr.f32.gmra.mrb[0].mxu0 %v374
      %v503 = vpop.f32.mrb[0].mxu0
      %v504 = vadd.f32 0.0, %v503
      %v505 = vpop.f32.mrb[0].mxu0
      %506 = vmatprep.mubr.f32.mxu0 0.0
      %507 = vmatmul.mubr.f32.gmra.mrb[0].mxu0 %v377
      %v508 = vpop.f32.mrb[0].mxu0
      %v509 = vadd.f32 0.0, %v508
      %v510 = vpop.f32.mrb[0].mxu0
      %511 = vmatprep.mubr.f32.mxu0 0.0
      %512 = vmatmul.mubr.f32.gmra.mrb[0].mxu0 %v380
      %v513 = vpop.f32.mrb[0].mxu0
      %v514 = vadd.f32 0.0, %v513
      %v515 = vpop.f32.mrb[0].mxu0
      %516 = vmatprep.mubr.f32.mxu0 0.0
      %517 = vmatmul.mubr.f32.gmra.mrb[0].mxu0 %v383
      %v518 = vpop.f32.mrb[0].mxu0
      %v519 = vadd.f32 0.0, %v518
      %v520 = vpop.f32.mrb[0].mxu0
      %521 = vmatprep.mubr.f32.mxu0 0.0
      %522 = vmatmul.mubr.f32.gmra.mrb[0].mxu0 %v386
      %v523 = vpop.f32.mrb[0].mxu0
      %v524 = vadd.f32 0.0, %v523
      %v525 = vpop.f32.mrb[0].mxu0
      %526 = vmatprep.mubr.f32.mxu0 0.0
      %527 = vmatmul.mubr.f32.gmra.mrb[0].mxu0 %v389
      %v528 = vpop.f32.mrb[0].mxu0
      %v529 = vadd.f32 0.0, %v528
      %v530 = vpop.f32.mrb[0].mxu0
      %531 = vmatprep.mubr.f32.mxu0 0.0
      %532 = vmatmul.mubr.f32.gmra.mrb[0].mxu0 %v392
      %v533 = vpop.f32.mrb[0].mxu0
      %v534 = vadd.f32 0.0, %v533
      %v535 = vpop.f32.mrb[0].mxu0
      %536 = vmatprep.mubr.f32.mxu0 0.0
      %537 = vmatmul.mubr.f32.gmra.mrb[0].mxu0 %v395
      %v538 = vpop.f32.mrb[0].mxu0
      %v539 = vadd.f32 0.0, %v538
      %v540 = vpop.f32.mrb[0].mxu0
      %541 = vdwg.mxu0
      %v542 = vtanh.pop %v464
      %v543 = vtanh.pop %v469
      %v544 = vtanh.pop %v474
      %v545 = vtanh.pop %v479
      %v546 = vtanh.pop %v484
      %v547 = vtanh.pop %v489
      %v548 = vtanh.pop %v494
      %v549 = vtanh.pop %v499
      %v550 = vtanh.pop %v504
      %v551 = vtanh.pop %v509
      %v552 = vtanh.pop %v514
      %v553 = vtanh.pop %v519
      %v554 = vtanh.pop %v524
      %v555 = vtanh.pop %v529
      %v556 = vtanh.pop %v534
      %v557 = vtanh.pop %v539
      %v558 = vld [vmem:[%s2] sm:$0x1]
      %v560 = vlaneseq
      %v561 = vshrl.u32 %v560, 7
      %v562 = vsub.s32 0, %v561
      %v563 = vrot.slane %v558, %v562
      %v565 = vmul.f32 %v542, %v563
      %v566 = vmul.f32 %v543, %v563
      %v567 = vmul.f32 %v544, %v563
      %v568 = vmul.f32 %v545, %v563
      %v569 = vmul.f32 %v546, %v563
      %v570 = vmul.f32 %v547, %v563
      %v571 = vmul.f32 %v548, %v563
      %v572 = vmul.f32 %v549, %v563
      %v573 = vmul.f32 %v550, %v563
      %v574 = vmul.f32 %v551, %v563
      %v575 = vmul.f32 %v552, %v563
      %v576 = vmul.f32 %v553, %v563
      %v577 = vmul.f32 %v554, %v563
      %v578 = vmul.f32 %v555, %v563
      %v579 = vmul.f32 %v556, %v563
      %v580 = vmul.f32 %v557, %v563
      %vm581 = vcmask 261120
      %v582 = vsel %vm581, %v565, 0.0
      %583 = vadd.xlane.f32.xlu0 %v582
      %v584 = vpop.xlane.xlu0 %583
      %v585 = vsel %vm581, %v566, 0.0
      %586 = vadd.xlane.f32.xlu0 %v585
      %v587 = vpop.xlane.xlu0 %586
      %v588 = vsel %vm581, %v567, 0.0
      %589 = vadd.xlane.f32.xlu0 %v588
      %v590 = vpop.xlane.xlu0 %589
      %v591 = vsel %vm581, %v568, 0.0
      %592 = vadd.xlane.f32.xlu0 %v591
      %v593 = vpop.xlane.xlu0 %592
      %v594 = vsel %vm581, %v569, 0.0
      %595 = vadd.xlane.f32.xlu0 %v594
      %v596 = vpop.xlane.xlu0 %595
      %v597 = vsel %vm581, %v570, 0.0
      %598 = vadd.xlane.f32.xlu0 %v597
      %v599 = vpop.xlane.xlu0 %598
      %v600 = vsel %vm581, %v571, 0.0
      %601 = vadd.xlane.f32.xlu0 %v600
      %v602 = vpop.xlane.xlu0 %601
      %v603 = vsel %vm581, %v572, 0.0
      %604 = vadd.xlane.f32.xlu0 %v603
      %v605 = vpop.xlane.xlu0 %604
      %v606 = vsel %vm581, %v573, 0.0
      %607 = vadd.xlane.f32.xlu0 %v606
      %v608 = vpop.xlane.xlu0 %607
      %v609 = vsel %vm581, %v574, 0.0
      %610 = vadd.xlane.f32.xlu0 %v609
      %v611 = vpop.xlane.xlu0 %610
      %v612 = vsel %vm581, %v575, 0.0
      %613 = vadd.xlane.f32.xlu0 %v612
      %v614 = vpop.xlane.xlu0 %613
      %v615 = vsel %vm581, %v576, 0.0
      %616 = vadd.xlane.f32.xlu0 %v615
      %v617 = vpop.xlane.xlu0 %616
      %v618 = vsel %vm581, %v577, 0.0
      %619 = vadd.xlane.f32.xlu0 %v618
      %v620 = vpop.xlane.xlu0 %619
      %v621 = vsel %vm581, %v578, 0.0
      %622 = vadd.xlane.f32.xlu0 %v621
      %v623 = vpop.xlane.xlu0 %622
      %v624 = vsel %vm581, %v579, 0.0
      %625 = vadd.xlane.f32.xlu0 %v624
      %v626 = vpop.xlane.xlu0 %625
      %v627 = vsel %vm581, %v580, 0.0
      %628 = vadd.xlane.f32.xlu0 %v627
      %v629 = vpop.xlane.xlu0 %628
      %v630 = vrot.slane %v584, 4
      %v631 = vmax.f32 %v584, %v630
      %v632 = vrot.slane %v631, 2
      %v633 = vmax.f32 %v631, %v632
      %v634 = vrot.slane %v633, 1
      %v635 = vmax.f32 %v633, %v634
      %v636 = vrot.slane %v587, 4
      %v637 = vmax.f32 %v587, %v636
      %v638 = vrot.slane %v637, 2
      %v639 = vmax.f32 %v637, %v638
      %v640 = vrot.slane %v639, 1
      %v641 = vmax.f32 %v639, %v640
      %v642 = vrot.slane %v590, 4
      %v643 = vmax.f32 %v590, %v642
      %v644 = vrot.slane %v643, 2
      %v645 = vmax.f32 %v643, %v644
      %v646 = vrot.slane %v645, 1
      %v647 = vmax.f32 %v645, %v646
      %v648 = vrot.slane %v593, 4
      %v649 = vmax.f32 %v593, %v648
      %v650 = vrot.slane %v649, 2
      %v651 = vmax.f32 %v649, %v650
      %v652 = vrot.slane %v651, 1
      %v653 = vmax.f32 %v651, %v652
      %v654 = vrot.slane %v596, 4
      %v655 = vmax.f32 %v596, %v654
      %v656 = vrot.slane %v655, 2
      %v657 = vmax.f32 %v655, %v656
      %v658 = vrot.slane %v657, 1
      %v659 = vmax.f32 %v657, %v658
      %v660 = vrot.slane %v599, 4
      %v661 = vmax.f32 %v599, %v660
      %v662 = vrot.slane %v661, 2
      %v663 = vmax.f32 %v661, %v662
      %v664 = vrot.slane %v663, 1
      %v665 = vmax.f32 %v663, %v664
      %v666 = vrot.slane %v602, 4
      %v667 = vmax.f32 %v602, %v666
      %v668 = vrot.slane %v667, 2
      %v669 = vmax.f32 %v667, %v668
      %v670 = vrot.slane %v669, 1
      %v671 = vmax.f32 %v669, %v670
      %v672 = vrot.slane %v605, 4
      %v673 = vmax.f32 %v605, %v672
      %v674 = vrot.slane %v673, 2
      %v675 = vmax.f32 %v673, %v674
      %v676 = vrot.slane %v675, 1
      %v677 = vmax.f32 %v675, %v676
      %v678 = vrot.slane %v608, 4
      %v679 = vmax.f32 %v608, %v678
      %v680 = vrot.slane %v679, 2
      %v681 = vmax.f32 %v679, %v680
      %v682 = vrot.slane %v681, 1
      %v683 = vmax.f32 %v681, %v682
      %v684 = vrot.slane %v611, 4
      %v685 = vmax.f32 %v611, %v684
      %v686 = vrot.slane %v685, 2
      %v687 = vmax.f32 %v685, %v686
      %v688 = vrot.slane %v687, 1
      %v689 = vmax.f32 %v687, %v688
      %v690 = vrot.slane %v614, 4
      %v691 = vmax.f32 %v614, %v690
      %v692 = vrot.slane %v691, 2
      %v693 = vmax.f32 %v691, %v692
      %v694 = vrot.slane %v693, 1
      %v695 = vmax.f32 %v693, %v694
      %v696 = vrot.slane %v617, 4
      %v697 = vmax.f32 %v617, %v696
      %v698 = vrot.slane %v697, 2
      %v699 = vmax.f32 %v697, %v698
      %v700 = vrot.slane %v699, 1
      %v701 = vmax.f32 %v699, %v700
      %v702 = vrot.slane %v620, 4
      %v703 = vmax.f32 %v620, %v702
      %v704 = vrot.slane %v703, 2
      %v705 = vmax.f32 %v703, %v704
      %v706 = vrot.slane %v705, 1
      %v707 = vmax.f32 %v705, %v706
      %v708 = vrot.slane %v623, 4
      %v709 = vmax.f32 %v623, %v708
      %v710 = vrot.slane %v709, 2
      %v711 = vmax.f32 %v709, %v710
      %v712 = vrot.slane %v711, 1
      %v713 = vmax.f32 %v711, %v712
      %v714 = vrot.slane %v626, 4
      %v715 = vmax.f32 %v626, %v714
      %v716 = vrot.slane %v715, 2
      %v717 = vmax.f32 %v715, %v716
      %v718 = vrot.slane %v717, 1
      %v719 = vmax.f32 %v717, %v718
      %v720 = vrot.slane %v629, 4
      %v721 = vmax.f32 %v629, %v720
      %v722 = vrot.slane %v721, 2
      %v723 = vmax.f32 %v721, %v722
      %v724 = vrot.slane %v723, 1
      %v725 = vmax.f32 %v723, %v724
      %v726 = vsub.f32 %v584, %v635
      %v727 = vsub.f32 %v587, %v641
      %v728 = vsub.f32 %v590, %v647
      %v729 = vsub.f32 %v593, %v653
      %v730 = vsub.f32 %v596, %v659
      %v731 = vsub.f32 %v599, %v665
      %v732 = vsub.f32 %v602, %v671
      %v733 = vsub.f32 %v605, %v677
      %v734 = vsub.f32 %v608, %v683
      %v735 = vsub.f32 %v611, %v689
      %v736 = vsub.f32 %v614, %v695
      %v737 = vsub.f32 %v617, %v701
      %v738 = vsub.f32 %v620, %v707
      %v739 = vsub.f32 %v623, %v713
      %v740 = vsub.f32 %v626, %v719
      %v741 = vsub.f32 %v629, %v725
      %v742 = vmul.f32 %v726, 1.442695
      %v743 = vpow.pop %v742
      %v744 = vmul.f32 %v727, 1.442695
      %v745 = vpow.pop %v744
      %v746 = vmul.f32 %v728, 1.442695
      %v747 = vpow.pop %v746
      %v748 = vmul.f32 %v729, 1.442695
      %v749 = vpow.pop %v748
      %v750 = vmul.f32 %v730, 1.442695
      %v751 = vpow.pop %v750
      %v752 = vmul.f32 %v731, 1.442695
      %v753 = vpow.pop %v752
      %v754 = vmul.f32 %v732, 1.442695
      %v755 = vpow.pop %v754
      %v756 = vmul.f32 %v733, 1.442695
      %v757 = vpow.pop %v756
      %v758 = vmul.f32 %v734, 1.442695
      %v759 = vpow.pop %v758
      %v760 = vmul.f32 %v735, 1.442695
      %v761 = vpow.pop %v760
      %v762 = vmul.f32 %v736, 1.442695
      %v763 = vpow.pop %v762
      %v764 = vmul.f32 %v737, 1.442695
      %v765 = vpow.pop %v764
      %v766 = vmul.f32 %v738, 1.442695
      %v767 = vpow.pop %v766
      %v768 = vmul.f32 %v739, 1.442695
      %v769 = vpow.pop %v768
      %v770 = vmul.f32 %v740, 1.442695
      %v771 = vpow.pop %v770
      %v772 = vmul.f32 %v741, 1.442695
      %v773 = vpow.pop %v772
      %v774 = vrot.slane %v743, 4
      %v775 = vadd.f32 %v743, %v774
      %v776 = vrot.slane %v775, 2
      %v777 = vadd.f32 %v775, %v776
      %v778 = vrot.slane %v777, 1
      %v779 = vadd.f32 %v777, %v778
      %v780 = vrot.slane %v745, 4
      %v781 = vadd.f32 %v745, %v780
      %v782 = vrot.slane %v781, 2
      %v783 = vadd.f32 %v781, %v782
      %v784 = vrot.slane %v783, 1
      %v785 = vadd.f32 %v783, %v784
      %v786 = vrot.slane %v747, 4
      %v787 = vadd.f32 %v747, %v786
      %v788 = vrot.slane %v787, 2
      %v789 = vadd.f32 %v787, %v788
      %v790 = vrot.slane %v789, 1
      %v791 = vadd.f32 %v789, %v790
      %v792 = vrot.slane %v749, 4
      %v793 = vadd.f32 %v749, %v792
      %v794 = vrot.slane %v793, 2
      %v795 = vadd.f32 %v793, %v794
      %v796 = vrot.slane %v795, 1
      %v797 = vadd.f32 %v795, %v796
      %v798 = vrot.slane %v751, 4
      %v799 = vadd.f32 %v751, %v798
      %v800 = vrot.slane %v799, 2
      %v801 = vadd.f32 %v799, %v800
      %v802 = vrot.slane %v801, 1
      %v803 = vadd.f32 %v801, %v802
      %v804 = vrot.slane %v753, 4
      %v805 = vadd.f32 %v753, %v804
      %v806 = vrot.slane %v805, 2
      %v807 = vadd.f32 %v805, %v806
      %v808 = vrot.slane %v807, 1
      %v809 = vadd.f32 %v807, %v808
      %v810 = vrot.slane %v755, 4
      %v811 = vadd.f32 %v755, %v810
      %v812 = vrot.slane %v811, 2
      %v813 = vadd.f32 %v811, %v812
      %v814 = vrot.slane %v813, 1
      %v815 = vadd.f32 %v813, %v814
      %v816 = vrot.slane %v757, 4
      %v817 = vadd.f32 %v757, %v816
      %v818 = vrot.slane %v817, 2
      %v819 = vadd.f32 %v817, %v818
      %v820 = vrot.slane %v819, 1
      %v821 = vadd.f32 %v819, %v820
      %v822 = vrot.slane %v759, 4
      %v823 = vadd.f32 %v759, %v822
      %v824 = vrot.slane %v823, 2
      %v825 = vadd.f32 %v823, %v824
      %v826 = vrot.slane %v825, 1
      %v827 = vadd.f32 %v825, %v826
      %v828 = vrot.slane %v761, 4
      %v829 = vadd.f32 %v761, %v828
      %v830 = vrot.slane %v829, 2
      %v831 = vadd.f32 %v829, %v830
      %v832 = vrot.slane %v831, 1
      %v833 = vadd.f32 %v831, %v832
      %v834 = vrot.slane %v763, 4
      %v835 = vadd.f32 %v763, %v834
      %v836 = vrot.slane %v835, 2
      %v837 = vadd.f32 %v835, %v836
      %v838 = vrot.slane %v837, 1
      %v839 = vadd.f32 %v837, %v838
      %v840 = vrot.slane %v765, 4
      %v841 = vadd.f32 %v765, %v840
      %v842 = vrot.slane %v841, 2
      %v843 = vadd.f32 %v841, %v842
      %v844 = vrot.slane %v843, 1
      %v845 = vadd.f32 %v843, %v844
      %v846 = vrot.slane %v767, 4
      %v847 = vadd.f32 %v767, %v846
      %v848 = vrot.slane %v847, 2
      %v849 = vadd.f32 %v847, %v848
      %v850 = vrot.slane %v849, 1
      %v851 = vadd.f32 %v849, %v850
      %v852 = vrot.slane %v769, 4
      %v853 = vadd.f32 %v769, %v852
      %v854 = vrot.slane %v853, 2
      %v855 = vadd.f32 %v853, %v854
      %v856 = vrot.slane %v855, 1
      %v857 = vadd.f32 %v855, %v856
      %v858 = vrot.slane %v771, 4
      %v859 = vadd.f32 %v771, %v858
      %v860 = vrot.slane %v859, 2
      %v861 = vadd.f32 %v859, %v860
      %v862 = vrot.slane %v861, 1
      %v863 = vadd.f32 %v861, %v862
      %v864 = vrot.slane %v773, 4
      %v865 = vadd.f32 %v773, %v864
      %v866 = vrot.slane %v865, 2
      %v867 = vadd.f32 %v865, %v866
      %v868 = vrot.slane %v867, 1
      %v869 = vadd.f32 %v867, %v868
      %v870 = vrcp.pop %v779
      %v871 = vmul.f32 %v743, %v870
      %v872 = vrcp.pop %v785
      %v873 = vmul.f32 %v745, %v872
      %v874 = vrcp.pop %v791
      %v875 = vmul.f32 %v747, %v874
      %v876 = vrcp.pop %v797
      %v877 = vmul.f32 %v749, %v876
      %v878 = vrcp.pop %v803
      %v879 = vmul.f32 %v751, %v878
      %v880 = vrcp.pop %v809
      %v881 = vmul.f32 %v753, %v880
      %v882 = vrcp.pop %v815
      %v883 = vmul.f32 %v755, %v882
      %v884 = vrcp.pop %v821
      %v885 = vmul.f32 %v757, %v884
      %v886 = vrcp.pop %v827
      %v887 = vmul.f32 %v759, %v886
      %v888 = vrcp.pop %v833
      %v889 = vmul.f32 %v761, %v888
      %v890 = vrcp.pop %v839
      %v891 = vmul.f32 %v763, %v890
      %v892 = vrcp.pop %v845
      %v893 = vmul.f32 %v765, %v892
      %v894 = vrcp.pop %v851
      %v895 = vmul.f32 %v767, %v894
      %v896 = vrcp.pop %v857
      %v897 = vmul.f32 %v769, %v896
      %v898 = vrcp.pop %v863
      %v899 = vmul.f32 %v771, %v898
      %v900 = vrcp.pop %v869
      %v901 = vmul.f32 %v773, %v900
      %v902 = vmul.f32 %v542, %v871
      %v903 = vmul.f32 %v543, %v873
      %v904 = vmul.f32 %v544, %v875
      %v905 = vmul.f32 %v545, %v877
      %v906 = vmul.f32 %v546, %v879
      %v907 = vmul.f32 %v547, %v881
      %v908 = vmul.f32 %v548, %v883
      %v909 = vmul.f32 %v549, %v885
      %v910 = vmul.f32 %v550, %v887
      %v911 = vmul.f32 %v551, %v889
      %v912 = vmul.f32 %v552, %v891
      %v913 = vmul.f32 %v553, %v893
      %v914 = vmul.f32 %v554, %v895
      %v915 = vmul.f32 %v555, %v897
      %v916 = vmul.f32 %v556, %v899
      %v917 = vmul.f32 %v557, %v901
      %v918 = vsel %vm581, %v902, 0.0
      %v919 = vrot.slane %v918, 4
      %v920 = vadd.f32 %v918, %v919
      %v921 = vrot.slane %v920, 2
      %v922 = vadd.f32 %v920, %v921
      %v923 = vrot.slane %v922, 1
      %v924 = vadd.f32 %v922, %v923
      %v925 = vsel %vm581, %v903, 0.0
      %v926 = vrot.slane %v925, 4
      %v927 = vadd.f32 %v925, %v926
      %v928 = vrot.slane %v927, 2
      %v929 = vadd.f32 %v927, %v928
      %v930 = vrot.slane %v929, 1
      %v931 = vadd.f32 %v929, %v930
      %v932 = vsel %vm581, %v904, 0.0
      %v933 = vrot.slane %v932, 4
      %v934 = vadd.f32 %v932, %v933
      %v935 = vrot.slane %v934, 2
      %v936 = vadd.f32 %v934, %v935
      %v937 = vrot.slane %v936, 1
      %v938 = vadd.f32 %v936, %v937
      %v939 = vsel %vm581, %v905, 0.0
      %v940 = vrot.slane %v939, 4
      %v941 = vadd.f32 %v939, %v940
      %v942 = vrot.slane %v941, 2
      %v943 = vadd.f32 %v941, %v942
      %v944 = vrot.slane %v943, 1
      %v945 = vadd.f32 %v943, %v944
      %v946 = vsel %vm581, %v906, 0.0
      %v947 = vrot.slane %v946, 4
      %v948 = vadd.f32 %v946, %v947
      %v949 = vrot.slane %v948, 2
      %v950 = vadd.f32 %v948, %v949
      %v951 = vrot.slane %v950, 1
      %v952 = vadd.f32 %v950, %v951
      %v953 = vsel %vm581, %v907, 0.0
      %v954 = vrot.slane %v953, 4
      %v955 = vadd.f32 %v953, %v954
      %v956 = vrot.slane %v955, 2
      %v957 = vadd.f32 %v955, %v956
      %v958 = vrot.slane %v957, 1
      %v959 = vadd.f32 %v957, %v958
      %v960 = vsel %vm581, %v908, 0.0
      %v961 = vrot.slane %v960, 4
      %v962 = vadd.f32 %v960, %v961
      %v963 = vrot.slane %v962, 2
      %v964 = vadd.f32 %v962, %v963
      %v965 = vrot.slane %v964, 1
      %v966 = vadd.f32 %v964, %v965
      %v967 = vsel %vm581, %v909, 0.0
      %v968 = vrot.slane %v967, 4
      %v969 = vadd.f32 %v967, %v968
      %v970 = vrot.slane %v969, 2
      %v971 = vadd.f32 %v969, %v970
      %v972 = vrot.slane %v971, 1
      %v973 = vadd.f32 %v971, %v972
      %v974 = vsel %vm581, %v910, 0.0
      %v975 = vrot.slane %v974, 4
      %v976 = vadd.f32 %v974, %v975
      %v977 = vrot.slane %v976, 2
      %v978 = vadd.f32 %v976, %v977
      %v979 = vrot.slane %v978, 1
      %v980 = vadd.f32 %v978, %v979
      %v981 = vsel %vm581, %v911, 0.0
      %v982 = vrot.slane %v981, 4
      %v983 = vadd.f32 %v981, %v982
      %v984 = vrot.slane %v983, 2
      %v985 = vadd.f32 %v983, %v984
      %v986 = vrot.slane %v985, 1
      %v987 = vadd.f32 %v985, %v986
      %v988 = vsel %vm581, %v912, 0.0
      %v989 = vrot.slane %v988, 4
      %v990 = vadd.f32 %v988, %v989
      %v991 = vrot.slane %v990, 2
      %v992 = vadd.f32 %v990, %v991
      %v993 = vrot.slane %v992, 1
      %v994 = vadd.f32 %v992, %v993
      %v995 = vsel %vm581, %v913, 0.0
      %v996 = vrot.slane %v995, 4
      %v997 = vadd.f32 %v995, %v996
      %v998 = vrot.slane %v997, 2
      %v999 = vadd.f32 %v997, %v998
      %v1000 = vrot.slane %v999, 1
      %v1001 = vadd.f32 %v999, %v1000
      %v1002 = vsel %vm581, %v914, 0.0
      %v1003 = vrot.slane %v1002, 4
      %v1004 = vadd.f32 %v1002, %v1003
      %v1005 = vrot.slane %v1004, 2
      %v1006 = vadd.f32 %v1004, %v1005
      %v1007 = vrot.slane %v1006, 1
      %v1008 = vadd.f32 %v1006, %v1007
      %v1009 = vsel %vm581, %v915, 0.0
      %v1010 = vrot.slane %v1009, 4
      %v1011 = vadd.f32 %v1009, %v1010
      %v1012 = vrot.slane %v1011, 2
      %v1013 = vadd.f32 %v1011, %v1012
      %v1014 = vrot.slane %v1013, 1
      %v1015 = vadd.f32 %v1013, %v1014
      %v1016 = vsel %vm581, %v916, 0.0
      %v1017 = vrot.slane %v1016, 4
      %v1018 = vadd.f32 %v1016, %v1017
      %v1019 = vrot.slane %v1018, 2
      %v1020 = vadd.f32 %v1018, %v1019
      %v1021 = vrot.slane %v1020, 1
      %v1022 = vadd.f32 %v1020, %v1021
      %v1023 = vsel %vm581, %v917, 0.0
      %v1024 = vrot.slane %v1023, 4
      %v1025 = vadd.f32 %v1023, %v1024
      %v1026 = vrot.slane %v1025, 2
      %v1027 = vadd.f32 %v1025, %v1026
      %v1028 = vrot.slane %v1027, 1
      %v1029 = vadd.f32 %v1027, %v1028
      %v1030 = vld [vmem:[%s3] sm:$0xff]
      %v1031 = vld [vmem:[%s3 + $0x8] sm:$0xff]
      %v1032 = vld [vmem:[%s3 + $0x10] sm:$0xff]
      %v1033 = vld [vmem:[%s3 + $0x18] sm:$0xff]
      %v1034 = vld [vmem:[%s4] sm:$0x1]
      %v1036 = vlaneseq
      %v1037 = vshrl.u32 %v1036, 7
      %v1038 = vsub.s32 0, %v1037
      %v1039 = vrot.slane %v1034, %v1038
      %vm1057 = vcmask 1041409
      %v1058 = vsel %vm1057, %v931, %v924
      %vm1059 = vcmask 1042434
      %v1060 = vsel %vm1059, %v938, %v1058
      %vm1061 = vcmask 1043459
      %v1062 = vsel %vm1061, %v945, %v1060
      %vm1063 = vcmask 1044484
      %v1064 = vsel %vm1063, %v952, %v1062
      %vm1065 = vcmask 1045509
      %v1066 = vsel %vm1065, %v959, %v1064
      %vm1067 = vcmask 1046534
      %v1068 = vsel %vm1067, %v966, %v1066
      %vm1069 = vcmask 1047559
      %v1070 = vsel %vm1069, %v973, %v1068
      %v1071 = vsel %vm1057, %v987, %v980
      %v1072 = vsel %vm1059, %v994, %v1071
      %v1073 = vsel %vm1061, %v1001, %v1072
      %v1074 = vsel %vm1063, %v1008, %v1073
      %v1075 = vsel %vm1065, %v1015, %v1074
      %v1076 = vsel %vm1067, %v1022, %v1075
      %v1077 = vsel %vm1069, %v1029, %v1076
      %v1078 = vsel %vm581, %v1070, 0
      %v1080 = vsel %vm581, %v1077, 0
      %1082 = vmatprep.subr.mxu0 0.0
      %1083 = vmatpush1.msra.mxu0 %v1030
      %1084 = vmatprep.subr.mxu0 0.0
      %1085 = vmatpush1.msra.mxu0 %v1031
      %1086 = vmatprep.subr.mxu0 0.0
      %1087 = vmatpush1.msra.mxu0 %v1032
      %1088 = vmatprep.subr.mxu0 0.0
      %1089 = vmatpush1.msra.mxu0 %v1033
      %1090 = vmatprep.subr.mxu0 0.0
      %1091 = vmatpush1.msra.mxu0 0.0
      %1092 = vmatprep.subr.mxu0 0.0
      %1093 = vmatpush1.msra.mxu0 0.0
      %1094 = vmatprep.subr.mxu0 0.0
      %1095 = vmatpush1.msra.mxu0 0.0
      %1096 = vmatprep.subr.mxu0 0.0
      %1097 = vmatpush1.msra.mxu0 0.0
      %1098 = vmatprep.subr.mxu0 0.0
      %1099 = vmatpush1.msra.mxu0 0.0
      %1100 = vmatprep.subr.mxu0 0.0
      %1101 = vmatpush1.msra.mxu0 0.0
      %1102 = vmatprep.subr.mxu0 0.0
      %1103 = vmatpush1.msra.mxu0 0.0
      %1104 = vmatprep.subr.mxu0 0.0
      %1105 = vmatpush1.msra.mxu0 0.0
      %1106 = vmatprep.subr.mxu0 0.0
      %1107 = vmatpush1.msra.mxu0 0.0
      %1108 = vmatprep.subr.mxu0 0.0
      %1109 = vmatpush1.msra.mxu0 0.0
      %1110 = vmatprep.subr.mxu0 0.0
      %1111 = vmatpush1.msra.mxu0 0.0
      %1112 = vmatprep.subr.mxu0 0.0
      %1113 = vmatpush1.msra.mxu0 0.0
      %1114 = vmatprep.subr.mxu0 0.0
      %1115 = vmatpush1.msra.mxu0 0.0
      %1116 = vmatprep.subr.mxu0 0.0
      %1117 = vmatpush1.msra.mxu0 0.0
      %1118 = vmatprep.subr.mxu0 0.0
      %1119 = vmatpush1.msra.mxu0 0.0
      %1120 = vmatprep.subr.mxu0 0.0
      %1121 = vmatpush1.msra.mxu0 0.0
      %1122 = vmatprep.subr.mxu0 0.0
      %1123 = vmatpush1.msra.mxu0 0.0
      %1124 = vmatprep.subr.mxu0 0.0
      %1125 = vmatpush1.msra.mxu0 0.0
      %1126 = vmatprep.subr.mxu0 0.0
      %1127 = vmatpush1.msra.mxu0 0.0
      %1128 = vmatprep.subr.mxu0 0.0
      %1129 = vmatpush1.msra.mxu0 0.0
      %1130 = vmatprep.subr.mxu0 0.0
      %1131 = vmatpush1.msra.mxu0 0.0
      %1132 = vmatprep.subr.mxu0 0.0
      %1133 = vmatpush1.msra.mxu0 0.0
      %1134 = vmatprep.subr.mxu0 0.0
      %1135 = vmatpush1.msra.mxu0 0.0
      %1136 = vmatprep.subr.mxu0 0.0
      %1137 = vmatpush1.msra.mxu0 0.0
      %1138 = vmatprep.subr.mxu0 0.0
      %1139 = vmatpush1.msra.mxu0 0.0
      %1140 = vmatprep.subr.mxu0 0.0
      %1141 = vmatpush1.msra.mxu0 0.0
      %1142 = vmatprep.subr.mxu0 0.0
      %1143 = vmatpush1.msra.mxu0 0.0
      %1144 = vmatprep.subr.mxu0 0.0
      %1145 = vmatpush1.msra.mxu0 0.0
      %1146 = vmatprep.mubr.f32.mxu0 0.0
      %1147 = vmatmul.mubr.f32.gmra.mrb[0].mxu0 %v1078
      %v1148 = vpop.f32.mrb[0].mxu0
      %v1149 = vadd.f32 %v1039, %v1148
      %v1150 = vpop.f32.mrb[0].mxu0
      %1151 = vmatprep.mubr.f32.mxu0 0.0
      %1152 = vmatmul.mubr.f32.gmra.mrb[0].mxu0 %v1080
      %v1153 = vpop.f32.mrb[0].mxu0
      %v1154 = vadd.f32 %v1039, %v1153
      %v1155 = vpop.f32.mrb[0].mxu0
      %1156 = vdwg.mxu0
      %vm1157 = vcmask 64512
      %v1158 = vsel %vm1157, %v1149, -inf
      %1159 = vmax.xlane.f32.xlu0 %v1158
      %v1160 = vpop.xlane.xlu0 %1159
      %v1161 = vsel %vm1157, %v1154, -inf
      %1162 = vmax.xlane.f32.xlu0 %v1161
      %v1163 = vpop.xlane.xlu0 %1162
      %v1164 = vsub.f32 %v1149, %v1160
      %v1165 = vsub.f32 %v1154, %v1163
      %v1166 = vmul.f32 %v1164, 1.442695
      %v1167 = vpow.pop %v1166
      %v1168 = vmul.f32 %v1165, 1.442695
      %v1169 = vpow.pop %v1168
      %v1170 = vsel %vm1157, %v1167, 0.0
      %1171 = vadd.xlane.f32.xlu0 %v1170
      %v1172 = vpop.xlane.xlu0 %1171
      %v1173 = vsel %vm1157, %v1169, 0.0
      %1174 = vadd.xlane.f32.xlu0 %v1173
      %v1175 = vpop.xlane.xlu0 %1174
      %v1176 = vrcp.pop %v1172
      %v1177 = vmul.f32 %v1167, %v1176
      %v1178 = vrcp.pop %v1175
      %v1179 = vmul.f32 %v1169, %v1178
      %1180 = vst.msk [vmem:[%s224] sm:$0xff] %vm1157, %v1177
      %1181 = vst.msk [vmem:[%s224 + $0x8] sm:$0xff] %vm1157, %v1179
      %s1182 = smul.u32 2, %s16
      %p1183 = scmp.lt.s32.totalorder %s1182, 3
      %s1184 = scalar_select %p1183, %s1182, 3
      %s1185 = smul.addr %s1184, 8
      %s1186 = scalar_lea.vmem %s5, %s1185
      // Predicated region
      $region41: #{code2vec_forward.1} parent=39 // pred_check
        %p1187 = pneg %p144
      $region42: #{code2vec_forward.1} parent=39 // pred_check_branch
        %1189 = sbr.rel (%p1187) target = $region44
      $region43: #{code2vec_forward.1} parent=39 // pred_region
        %s1190 = smul.u32 2, %s16
      $region44: #{code2vec_forward.1} parent=39 // pred_fallthru
        _
    $region40: #{code2vec_forward.1} parent=5 // pred_fallthru
      _
    %p1191 = scmp.le.s32.totalorder 2, %s11
    // Predicated region
    $region45: #{code2vec_forward.1} parent=5 // pred_check
      %p1192 = pneg %p1191
    $region46: #{code2vec_forward.1} parent=5 // pred_check_branch
      %1194 = sbr.rel (%p1192) target = $region48
    $region47: #{code2vec_forward.1} parent=5 // pred_region
      %s1195 = ssub.s32 %s11, 2
      // Predicated region
      $region49: #{code2vec_forward.1} parent=47 // pred_check
        %p1196 = pneg %p150
      $region50: #{code2vec_forward.1} parent=47 // pred_check_branch
        %1198 = sbr.rel (%p1196) target = $region52
      $region51: #{code2vec_forward.1} parent=47 // pred_region
        %s1199 = smul.u32 2, %s17
        %p1200 = scmp.lt.s32.totalorder %s1199, 3
        %s1201 = scalar_select %p1200, %s1199, 3
        %s1202 = smul.addr %s1201, 8
        %s1203 = scalar_lea.vmem %s5, %s1202
      $region52: #{code2vec_forward.1} parent=47 // pred_fallthru
        _
    $region48: #{code2vec_forward.1} parent=5 // pred_fallthru
      _
  $region6: #{code2vec_forward.1} parent=0 // loop_footer
    %s15 = sadd.s32 1, %s11
  $region7: #{code2vec_forward.1} parent=0 // loop_footer_branch
    %10 = sbr.rel target = $region3
  $region8: #{code2vec_forward.1} parent=0 // loop_exit
    _

</llo_original>
